<compile_context>
chip_gen: v5e
topology: v5e:2x2
jax: 0.10.0
libtpu: 0.0.40
codegen_flags: <defaults>
</compile_context>

<pallas_src>
import functools

import jax
import jax.numpy as jnp
from jax.experimental import pallas as pl
from jax.experimental.pallas import tpu as pltpu


def _round_up(x, m):
    return ((x + m - 1) // m) * m


# ---------------------------------------------------------------------------
# In-kernel activation (mirror of `func(func_name)` from the PyTorch module).
# `valid_dim` masks lane padding for softmax so padded lanes never leak into
# the normalization.
# ---------------------------------------------------------------------------
def _apply_trans(name, h, valid_dim):
    if name is None:
        return h
    elif name == "tanh":
        return jnp.tanh(h)
    elif name == "relu":
        return jnp.maximum(h, 0.0)
    elif name == "sigmoid":
        return jax.nn.sigmoid(h)
    elif name == "softmax":
        padded_dim = h.shape[-1]
        if valid_dim < padded_dim:
            lane = jax.lax.broadcasted_iota(jnp.int32, h.shape, dimension=h.ndim - 1)
            h = jnp.where(lane < valid_dim, h, jnp.float32(-1e30))
        m = jnp.max(h, axis=-1, keepdims=True)
        e = jnp.exp(h - m)
        denom = jnp.sum(e, axis=-1, keepdims=True)
        return e * pl.reciprocal(denom, approx=True)
    else:
        raise AssertionError("Invalid func_name.")


def _fcn_kernel(layer_num, hid_trans, out_trans, out_valid_dims, x_ref, *refs):
    # refs layout: w0, b0, w1, b1, ..., w_{L-1}, b_{L-1}, out_ref
    w_refs = refs[0 : 2 * layer_num : 2]
    b_refs = refs[1 : 2 * layer_num : 2]
    out_ref = refs[2 * layer_num]

    compute_dtype = x_ref.dtype  # f32 or bf16 (MXU operand dtype)
    h = x_ref[...]
    for i in range(layer_num):
        # MXU matmul with f32 accumulation; bias add + activation always in f32.
        acc = jnp.dot(h, w_refs[i][...], preferred_element_type=jnp.float32)
        acc = acc + b_refs[i][...].astype(jnp.float32)  # [1, F] broadcast, once/layer
        if i < layer_num - 1:
            acc = _apply_trans(hid_trans, acc, out_valid_dims[i])
            h = acc.astype(compute_dtype)
        else:
            if out_trans is not None:
                acc = _apply_trans(out_trans, acc, out_valid_dims[i])
            out_ref[...] = acc.astype(out_ref.dtype)


# ---------------------------------------------------------------------------
# Batch-tile heuristic: largest TB such that resident params + double-buffered
# in/out activation tiles + largest f32 intermediate fit a conservative VMEM
# budget (sized for v7x's 64 MiB VMEM per TensorCore).
# ---------------------------------------------------------------------------
def _pick_batch_tile(batch, feats_pad, compute_itemsize,
                     vmem_budget_bytes=24 * 1024 * 1024):
    layer_num = len(feats_pad) - 1
    param_bytes = sum(
        feats_pad[i] * feats_pad[i + 1] * compute_itemsize + feats_pad[i + 1] * 4
        for i in range(layer_num)
    )
    b_ceil = _round_up(batch, 8)
    for tb in (1024, 512, 256, 128, 64, 32, 16, 8):
        if tb > b_ceil:
            continue
        act_bytes = 2 * tb * (feats_pad[0] * compute_itemsize + feats_pad[-1] * 4)
        inter_bytes = tb * max(feats_pad) * 4
        if param_bytes + act_bytes + inter_bytes <= vmem_budget_bytes:
            return tb
    return 8


def _pad_to(a, shape):
    pads = [(0, shape[d] - a.shape[d]) for d in range(a.ndim)]
    if all(p == (0, 0) for p in pads):
        return a
    return jnp.pad(a, pads)


def fold_batchnorm(weight, bias, gamma, beta, running_mean, running_var, eps=1e-5):
    """Fold an eval-mode BatchNorm1d (applied after Linear) into the Linear params.

    weight: [F_in, F_out] (pre-transposed), bias: [1, F_out] or [F_out].
    Returns (weight', bias') such that BN(x @ W + b) == x @ W' + b'.
    """
    scale = gamma / jnp.sqrt(running_var + eps)           # [F_out]
    w_f = weight * scale[None, :]
    b_f = (jnp.reshape(bias, (-1,)) - running_mean) * scale + beta
    return w_f, jnp.reshape(b_f, (1, -1))


def fcn_forward(x, weights, biases, hid_trans="tanh", out_trans=None,
                use_bf16=False, batch_tile=None):
    """Fused FCN forward pass in a single batch-tiled Pallas TPU kernel.

    x:        [B, features[0]] float32
    weights:  list of [features[i], features[i+1]] float32 (pre-transposed)
    biases:   list of [features[i+1]] or [1, features[i+1]] float32
    use_bf16: cast MXU operands (x, weights) to bf16 (v6e/v7x peak); accumulation
              and elementwise stay f32.
    """
    layer_num = len(weights)
    assert layer_num > 0, "Invalid fc parameters"
    B = x.shape[0]
    feats = [x.shape[1]] + [w.shape[1] for w in weights]
    feats_pad = [_round_up(f, 128) for f in feats]

    compute_dtype = jnp.bfloat16 if use_bf16 else jnp.float32
    itemsize = jnp.dtype(compute_dtype).itemsize

    TB = batch_tile if batch_tile is not None else _pick_batch_tile(B, feats_pad, itemsize)
    B_pad = _round_up(B, TB)

    # Pad activations/params to lane-dense (multiple-of-128) feature widths.
    x_p = _pad_to(x.astype(compute_dtype), (B_pad, feats_pad[0]))
    flat_params = []
    for i, (w, b) in enumerate(zip(weights, biases)):
        w_p = _pad_to(w.astype(compute_dtype), (feats_pad[i], feats_pad[i + 1]))
        b_p = _pad_to(jnp.reshape(b, (1, -1)).astype(jnp.float32), (1, feats_pad[i + 1]))
        flat_params += [w_p, b_p]

    # BlockSpecs: x/out tiled over the batch grid; weights/biases pinned resident.
    in_specs = [pl.BlockSpec((TB, feats_pad[0]), lambda i: (i, 0))]
    for li in range(layer_num):
        fi, fo = feats_pad[li], feats_pad[li + 1]
        in_specs.append(pl.BlockSpec((fi, fo), lambda i: (0, 0)))
        in_specs.append(pl.BlockSpec((1, fo), lambda i: (0, 0)))
    out_specs = pl.BlockSpec((TB, feats_pad[-1]), lambda i: (i, 0))

    # Advisory cost estimate for XLA scheduling around the custom call.
    flops = 2 * B * sum(feats[i] * feats[i + 1] for i in range(layer_num))
    transcendentals = 0
    if hid_trans in ("tanh", "sigmoid", "softmax"):
        transcendentals += B * sum(feats[1:-1])
    if out_trans in ("tanh", "sigmoid", "softmax"):
        transcendentals += B * feats[-1]
    param_bytes = sum(int(p.size) * p.dtype.itemsize for p in flat_params)
    bytes_accessed = int(x_p.size) * itemsize + B_pad * feats_pad[-1] * 4 + param_bytes
    cost = pl.CostEstimate(flops=int(flops),
                           transcendentals=int(transcendentals),
                           bytes_accessed=int(bytes_accessed))

    kernel = functools.partial(_fcn_kernel, layer_num, hid_trans, out_trans,
                               tuple(feats[1:]))

    out_p = pl.pallas_call(
        kernel,
        out_shape=jax.ShapeDtypeStruct((B_pad, feats_pad[-1]), jnp.float32),
        grid=(B_pad // TB,),
        in_specs=in_specs,
        out_specs=out_specs,
        compiler_params=pltpu.CompilerParams(dimension_semantics=("parallel",)),
        cost_estimate=cost,
    )(x_p, *flat_params)

    return out_p[:B, : feats[-1]]


# ---------------------------------------------------------------------------
# Parameter init + pure-JAX reference (for correctness checking).
# ---------------------------------------------------------------------------
def init_fcn_params(key, features):
    """Deterministic init matching nn.Linear shapes (stored transposed)."""
    weights, biases = [], []
    for i in range(len(features) - 1):
        key, wk, bk = jax.random.split(key, 3)
        bound = 1.0 / float(features[i]) ** 0.5
        w = jax.random.uniform(wk, (features[i], features[i + 1]), jnp.float32,
                               -bound, bound)
        b = jax.random.uniform(bk, (1, features[i + 1]), jnp.float32, -bound, bound)
        weights.append(w)
        biases.append(b)
    return weights, biases


def _ref_trans(name, h):
    if name is None:
        return h
    elif name == "tanh":
        return jnp.tanh(h)
    elif name == "relu":
        return jnp.maximum(h, 0.0)
    elif name == "sigmoid":
        return jax.nn.sigmoid(h)
    elif name == "softmax":
        return jax.nn.softmax(h, axis=1)
    else:
        raise AssertionError("Invalid func_name.")


def fcn_reference(x, weights, biases, hid_trans="tanh", out_trans=None,
                  use_bf16=False):
    h = x
    layer_num = len(weights)
    for i in range(layer_num):
        lhs = h.astype(jnp.bfloat16) if use_bf16 else h
        rhs = weights[i].astype(jnp.bfloat16) if use_bf16 else weights[i]
        h = jnp.dot(lhs, rhs, preferred_element_type=jnp.float32) + biases[i]
        if i < layer_num - 1:
            h = _ref_trans(hid_trans, h)
    if out_trans is not None:
        h = _ref_trans(out_trans, h)
    return h


if __name__ == "__main__":
    key = jax.random.PRNGKey(0)
    features = [32, 64, 16]  # FCN(features=[32, 64, 16], hid_trans='tanh')
    batch = 8

    key, xk, pk = jax.random.split(key, 3)
    x = jax.random.normal(xk, (batch, features[0]), jnp.float32)
    weights, biases = init_fcn_params(pk, features)

    # 1) Default config, f32 MXU operands (tight tolerance).
    out = fcn_forward(x, weights, biases, hid_trans="tanh", out_trans=None)
    out = jax.block_until_ready(out)
    ref = fcn_reference(x, weights, biases, hid_trans="tanh", out_trans=None)
    assert out.shape == (batch, features[-1])
    assert jnp.allclose(out, ref, atol=1e-4, rtol=1e-4), "f32 mismatch vs reference"

    # 2) bf16 MXU-operand path (v6e/v7x optimization); compare vs bf16 reference.
    out_bf = fcn_forward(x, weights, biases, hid_trans="tanh", out_trans=None,
                         use_bf16=True)
    out_bf = jax.block_until_ready(out_bf)
    ref_bf = fcn_reference(x, weights, biases, hid_trans="tanh", out_trans=None,
                           use_bf16=True)
    assert jnp.allclose(out_bf, ref_bf, atol=2e-2, rtol=2e-2), "bf16 mismatch"

    # 3) Softmax output transform (exercises lane-padding mask + approx recip).
    out_sm = fcn_forward(x, weights, biases, hid_trans="tanh", out_trans="softmax")
    out_sm = jax.block_until_ready(out_sm)
    ref_sm = fcn_reference(x, weights, biases, hid_trans="tanh", out_trans="softmax")
    assert jnp.allclose(out_sm, ref_sm, atol=1e-2, rtol=1e-2), "softmax mismatch"

    # 4) Eval-mode BatchNorm1d folded into the hidden Linear (hid_bn=1 equivalent).
    key, gk, bk2, mk, vk = jax.random.split(key, 5)
    gamma = 1.0 + 0.1 * jax.random.normal(gk, (features[1],), jnp.float32)
    beta = 0.1 * jax.random.normal(bk2, (features[1],), jnp.float32)
    r_mean = 0.1 * jax.random.normal(mk, (features[1],), jnp.float32)
    r_var = jnp.abs(1.0 + 0.1 * jax.random.normal(vk, (features[1],), jnp.float32))
    w0_f, b0_f = fold_batchnorm(weights[0], biases[0], gamma, beta, r_mean, r_var)
    out_bn = fcn_forward(x, [w0_f, weights[1]], [b0_f, biases[1]],
                         hid_trans="tanh", out_trans=None)
    out_bn = jax.block_until_ready(out_bn)
    h_ref = jnp.dot(x, weights[0]) + biases[0]
    h_ref = gamma * (h_ref - r_mean) / jnp.sqrt(r_var + 1e-5) + beta
    ref_bn = jnp.dot(jnp.tanh(h_ref), weights[1]) + biases[1]
    assert jnp.allclose(out_bn, ref_bn, atol=1e-4, rtol=1e-4), "BN-fold mismatch"

    print("KERNEL_OK")
</pallas_src>

<mosaic_0001>
module attributes {stable_mosaic.version = 11 : i64} {
  func.func @_fcn_kernel(%arg0: i32, %arg1: memref<8x128xf32, #tpu.memory_space<vmem>>, %arg2: memref<128x128xf32, #tpu.memory_space<vmem>>, %arg3: memref<1x128xf32, #tpu.memory_space<vmem>>, %arg4: memref<128x128xf32, #tpu.memory_space<vmem>>, %arg5: memref<1x128xf32, #tpu.memory_space<vmem>>, %arg6: memref<8x128xf32, #tpu.memory_space<vmem>>) attributes {dimension_semantics = [#tpu.dimension_semantics<parallel>], iteration_bounds = array<i64: 1>, scalar_prefetch = 0 : i64, scratch_operands = 0 : i64, tpu.core_type = #tpu.core_type<tc>, window_params = [{transform_indices = @transform_0, window_bounds = array<i64: 8, 128>}, {pipeline_mode = #tpu.pipeline_mode<synchronous>, transform_indices = @transform_1, window_bounds = array<i64: 128, 128>}, {pipeline_mode = #tpu.pipeline_mode<synchronous>, transform_indices = @transform_2, window_bounds = array<i64: 1, 128>}, {pipeline_mode = #tpu.pipeline_mode<synchronous>, transform_indices = @transform_3, window_bounds = array<i64: 128, 128>}, {pipeline_mode = #tpu.pipeline_mode<synchronous>, transform_indices = @transform_4, window_bounds = array<i64: 1, 128>}, {transform_indices = @transform_5, window_bounds = array<i64: 8, 128>}]} {
    %c0 = arith.constant 0 : index
    %c0_0 = arith.constant 0 : index
    %0 = vector.load %arg1[%c0, %c0_0] : memref<8x128xf32, #tpu.memory_space<vmem>>, vector<8x128xf32>
    %c0_1 = arith.constant 0 : index
    %c0_2 = arith.constant 0 : index
    %1 = vector.load %arg2[%c0_1, %c0_2] : memref<128x128xf32, #tpu.memory_space<vmem>>, vector<128x128xf32>
    %cst = arith.constant dense<0.000000e+00> : vector<8x128xf32>
    %2 = tpu.matmul %0, %1, %cst {dimension_numbers = #tpu.dot_dimension_numbers<[1], [0], [0], [1], [0, 0, 1, 1], [], []>} : vector<8x128xf32>, vector<128x128xf32>, vector<8x128xf32> -> vector<8x128xf32>
    %c0_3 = arith.constant 0 : index
    %c0_4 = arith.constant 0 : index
    %3 = vector.load %arg3[%c0_3, %c0_4] : memref<1x128xf32, #tpu.memory_space<vmem>>, vector<1x128xf32>
    %4 = vector.broadcast %3 : vector<1x128xf32> to vector<8x128xf32>
    %5 = arith.addf %2, %4 : vector<8x128xf32>
    %6 = math.tanh %5 : vector<8x128xf32>
    %c0_5 = arith.constant 0 : index
    %c0_6 = arith.constant 0 : index
    %7 = vector.load %arg4[%c0_5, %c0_6] : memref<128x128xf32, #tpu.memory_space<vmem>>, vector<128x128xf32>
    %cst_7 = arith.constant dense<0.000000e+00> : vector<8x128xf32>
    %8 = tpu.matmul %6, %7, %cst_7 {dimension_numbers = #tpu.dot_dimension_numbers<[1], [0], [0], [1], [0, 0, 1, 1], [], []>} : vector<8x128xf32>, vector<128x128xf32>, vector<8x128xf32> -> vector<8x128xf32>
    %c0_8 = arith.constant 0 : index
    %c0_9 = arith.constant 0 : index
    %9 = vector.load %arg5[%c0_8, %c0_9] : memref<1x128xf32, #tpu.memory_space<vmem>>, vector<1x128xf32>
    %10 = vector.broadcast %9 : vector<1x128xf32> to vector<8x128xf32>
    %11 = arith.addf %8, %10 : vector<8x128xf32>
    %c0_10 = arith.constant 0 : index
    %c0_11 = arith.constant 0 : index
    %12 = vector.load %arg6[%c0_10, %c0_11] : memref<8x128xf32, #tpu.memory_space<vmem>>, vector<8x128xf32>
    tpu.vector_store %arg6[%c0_10, %c0_11], %11 {strides = array<i32>} : memref<8x128xf32, #tpu.memory_space<vmem>>, vector<8x128xf32>,
    return
  }
  func.func @transform_0(%arg0: i32) -> (i32, i32) {
    %c0_i32 = arith.constant 0 : i32
    %c0_i32_0 = arith.constant 0 : i32
    return %arg0, %c0_i32 : i32, i32
  }
  func.func @transform_1(%arg0: i32) -> (i32, i32) {
    %c0_i32 = arith.constant 0 : i32
    %c0_i32_0 = arith.constant 0 : i32
    %c0_i32_1 = arith.constant 0 : i32
    return %c0_i32, %c0_i32_0 : i32, i32
  }
  func.func @transform_2(%arg0: i32) -> (i32, i32) {
    %c0_i32 = arith.constant 0 : i32
    %c0_i32_0 = arith.constant 0 : i32
    %c0_i32_1 = arith.constant 0 : i32
    return %c0_i32, %c0_i32_0 : i32, i32
  }
  func.func @transform_3(%arg0: i32) -> (i32, i32) {
    %c0_i32 = arith.constant 0 : i32
    %c0_i32_0 = arith.constant 0 : i32
    %c0_i32_1 = arith.constant 0 : i32
    return %c0_i32, %c0_i32_0 : i32, i32
  }
  func.func @transform_4(%arg0: i32) -> (i32, i32) {
    %c0_i32 = arith.constant 0 : i32
    %c0_i32_0 = arith.constant 0 : i32
    %c0_i32_1 = arith.constant 0 : i32
    return %c0_i32, %c0_i32_0 : i32, i32
  }
  func.func @transform_5(%arg0: i32) -> (i32, i32) {
    %c0_i32 = arith.constant 0 : i32
    %c0_i32_0 = arith.constant 0 : i32
    return %arg0, %c0_i32 : i32, i32
  }
}

</mosaic_0001>

<llo_original>
// kernel: tpu_custom_call.1
$region0: #{tpu_custom_call.1}
  #allocation0 [shape = 'u32[]', space=smem, size = 0x4, offset = 0x4, fixed_abs, tag = 'smem constant byte address 0x4 - core index']
  #allocation1 [shape = 'u32[72,128]{1,0:T(1,128)}', space=vmem, size = 0x9000, scoped, tag = 'internal scratch']
  %s0 = inlined_call_operand.hbm [shape: f32[8,128], index: 0, kind: input, shape index: {}]
  %s1 = inlined_call_operand.hbm [shape: f32[128,128], index: 1, kind: input, shape index: {}]
  %s2 = inlined_call_operand.vmem [shape: f32[1,128], index: 2, kind: input, shape index: {}]
  %s3 = inlined_call_operand.hbm [shape: f32[128,128], index: 3, kind: input, shape index: {}]
  %s4 = inlined_call_operand.vmem [shape: f32[1,128], index: 4, kind: input, shape index: {}]
  %s5 = inlined_call_operand.hbm [shape: f32[8,128], index: 5, kind: output, shape index: {}]
  %s6 = sld [smem:[#allocation0]]
  $region42: #{tpu_custom_call.1} parent=0
    _
  %s8 = ssub.s32 1, %s6
  %s9 = scalar_select 0, %s8, %s6
  $region1: #{tpu_custom_call.1} parent=0
    #allocation2 [shape = 'u8[4096]{0}', space=vmem, size = 0x1000, scoped, tag = 'input window, operand 0, single buffered']
    #allocation3 [shape = 's32[1]{0}', space=sflag, size = 0x4, scoped, tag = 'scoped memory for tpu_custom_call.1']
    #allocation4 [shape = 's32[1]{0}', space=sflag, size = 0x4, scoped, tag = 'scoped memory for tpu_custom_call.1']
    #allocation5 [shape = 'u8[65536]{0}', space=vmem, size = 0x10000, scoped, tag = 'input window, operand 1, single buffered']
    #allocation6 [shape = 's32[1]{0}', space=sflag, size = 0x4, scoped, tag = 'scoped memory for tpu_custom_call.1']
    #allocation7 [shape = 'u8[65536]{0}', space=vmem, size = 0x10000, scoped, tag = 'input window, operand 3, single buffered']
    #allocation8 [shape = 'u8[4096]{0}', space=vmem, size = 0x1000, scoped, tag = 'output window, operand 0, single buffered']
    %10 = vsyncpa [#allocation3], 0
    %11 = vsyncpa [#allocation6], 0
    %12 = vsyncpa [#allocation4], 0
    // Predicated region
    $region2: #{tpu_custom_call.1} parent=1 // pred_check
      _
    $region3: #{tpu_custom_call.1} parent=1 // pred_check_branch
      %14 = sbr.rel (0) target = $region5
    $region4: #{tpu_custom_call.1} parent=1 // pred_region
      %16 = vsyncadd [#allocation3], 0
      %s18 = sshll.u32 %s0, 4
      %s19 = int_to_ptr.hbm [resolvable:$true] %s18
      %s20 = sshll.u32 [#allocation2], 4
      %s21 = int_to_ptr.vmem [resolvable:$true] %s20
      %23 = dma.hbm_to_vmem [thread:$0]  %s19, 128, %s21, [#allocation3]
    $region5: #{tpu_custom_call.1} parent=1 // pred_fallthru
      _
    // Predicated region
    $region6: #{tpu_custom_call.1} parent=1 // pred_check
      _
    $region7: #{tpu_custom_call.1} parent=1 // pred_check_branch
      %25 = sbr.rel (0) target = $region9
    $region8: #{tpu_custom_call.1} parent=1 // pred_region
      %27 = vsyncadd [#allocation6], 0
      %s28 = sshll.u32 %s1, 4
      %s29 = int_to_ptr.hbm [resolvable:$true] %s28
      %s30 = sshll.u32 [#allocation5], 4
      %s31 = int_to_ptr.vmem [resolvable:$true] %s30
      %36 = dma.hbm_to_vmem [thread:$0]  %s29, 2048, %s31, [#allocation6], 128, 128, 8
    $region9: #{tpu_custom_call.1} parent=1 // pred_fallthru
      _
    // Predicated region
    $region10: #{tpu_custom_call.1} parent=1 // pred_check
      _
    $region11: #{tpu_custom_call.1} parent=1 // pred_check_branch
      %38 = sbr.rel (0) target = $region13
    $region12: #{tpu_custom_call.1} parent=1 // pred_region
      _
    $region13: #{tpu_custom_call.1} parent=1 // pred_fallthru
      _
    // Predicated region
    $region14: #{tpu_custom_call.1} parent=1 // pred_check
      _
    $region15: #{tpu_custom_call.1} parent=1 // pred_check_branch
      %40 = sbr.rel (0) target = $region17
    $region16: #{tpu_custom_call.1} parent=1 // pred_region
      %42 = vsyncadd [#allocation6], 0
      %s43 = sshll.u32 %s3, 4
      %s44 = int_to_ptr.hbm [resolvable:$true] %s43
      %s45 = sshll.u32 [#allocation7], 4
      %s46 = int_to_ptr.vmem [resolvable:$true] %s45
      %51 = dma.hbm_to_vmem [thread:$0]  %s44, 2048, %s46, [#allocation6], 128, 128, 8
    $region17: #{tpu_custom_call.1} parent=1 // pred_fallthru
      _
    // Predicated region
    $region18: #{tpu_custom_call.1} parent=1 // pred_check
      _
    $region19: #{tpu_custom_call.1} parent=1 // pred_check_branch
      %53 = sbr.rel (0) target = $region21
    $region20: #{tpu_custom_call.1} parent=1 // pred_region
      _
    $region21: #{tpu_custom_call.1} parent=1 // pred_fallthru
      _
    // Predicated region
    $region22: #{tpu_custom_call.1} parent=1 // pred_check
      _
    $region23: #{tpu_custom_call.1} parent=1 // pred_check_branch
      %55 = sbr.rel (0) target = $region25
    $region24: #{tpu_custom_call.1} parent=1 // pred_region
      %57 = dma.done [#allocation3], 128
    $region25: #{tpu_custom_call.1} parent=1 // pred_fallthru
      _
    // Predicated region
    $region26: #{tpu_custom_call.1} parent=1 // pred_check
      _
    $region27: #{tpu_custom_call.1} parent=1 // pred_check_branch
      %59 = sbr.rel (0) target = $region29
    $region28: #{tpu_custom_call.1} parent=1 // pred_region
      %61 = dma.done [#allocation6], 2048
    $region29: #{tpu_custom_call.1} parent=1 // pred_fallthru
      _
    // Predicated region
    $region30: #{tpu_custom_call.1} parent=1 // pred_check
      _
    $region31: #{tpu_custom_call.1} parent=1 // pred_check_branch
      %63 = sbr.rel (0) target = $region33
    $region32: #{tpu_custom_call.1} parent=1 // pred_region
      %65 = dma.done [#allocation6], 2048
    $region33: #{tpu_custom_call.1} parent=1 // pred_fallthru
      _
    %v66 = vld [vmem:[#allocation2] sm:$0xff]
    %v67 = vld [vmem:[#allocation5] sm:$0xff]
    %v68 = vld [vmem:[#allocation5 + $0x8] sm:$0xff]
    %v69 = vld [vmem:[#allocation5 + $0x10] sm:$0xff]
    %v70 = vld [vmem:[#allocation5 + $0x18] sm:$0xff]
    %v71 = vld [vmem:[#allocation5 + $0x20] sm:$0xff]
    %v72 = vld [vmem:[#allocation5 + $0x28] sm:$0xff]
    %v73 = vld [vmem:[#allocation5 + $0x30] sm:$0xff]
    %v74 = vld [vmem:[#allocation5 + $0x38] sm:$0xff]
    %v75 = vld [vmem:[#allocation5 + $0x40] sm:$0xff]
    %v76 = vld [vmem:[#allocation5 + $0x48] sm:$0xff]
    %v77 = vld [vmem:[#allocation5 + $0x50] sm:$0xff]
    %v78 = vld [vmem:[#allocation5 + $0x58] sm:$0xff]
    %v79 = vld [vmem:[#allocation5 + $0x60] sm:$0xff]
    %v80 = vld [vmem:[#allocation5 + $0x68] sm:$0xff]
    %v81 = vld [vmem:[#allocation5 + $0x70] sm:$0xff]
    %v82 = vld [vmem:[#allocation5 + $0x78] sm:$0xff]
    %v83 = vld [vmem:[%s2] sm:$0x1]
    %v85 = vperm.slane %v83, 0
    %87 = vmatpush.msra.mxu0 %v82
    %88 = vmatpush.msra.mxu0 %v81
    %89 = vmatpush.msra.mxu0 %v80
    %90 = vmatpush.msra.mxu0 %v79
    %91 = vmatpush.msra.mxu0 %v78
    %92 = vmatpush.msra.mxu0 %v77
    %93 = vmatpush.msra.mxu0 %v76
    %94 = vmatpush.msra.mxu0 %v75
    %95 = vmatpush.msra.mxu0 %v74
    %96 = vmatpush.msra.mxu0 %v73
    %97 = vmatpush.msra.mxu0 %v72
    %98 = vmatpush.msra.mxu0 %v71
    %99 = vmatpush.msra.mxu0 %v70
    %100 = vmatpush.msra.mxu0 %v69
    %101 = vmatpush.msra.mxu0 %v68
    %102 = vmatpush.msra.mxu0 %v67
    %103 = vmatmul.f32.gmra.mxu0 %v66
    %v104 = vpop.f32.mrf.mxu0
    %v105 = vadd.f32 %v85, %v104
    %106 = vdwg.mxu0
    %v107 = vtanh.pop %v105
    %v108 = vld [vmem:[#allocation7] sm:$0xff]
    %v109 = vld [vmem:[#allocation7 + $0x8] sm:$0xff]
    %v110 = vld [vmem:[#allocation7 + $0x10] sm:$0xff]
    %v111 = vld [vmem:[#allocation7 + $0x18] sm:$0xff]
    %v112 = vld [vmem:[#allocation7 + $0x20] sm:$0xff]
    %v113 = vld [vmem:[#allocation7 + $0x28] sm:$0xff]
    %v114 = vld [vmem:[#allocation7 + $0x30] sm:$0xff]
    %v115 = vld [vmem:[#allocation7 + $0x38] sm:$0xff]
    %v116 = vld [vmem:[#allocation7 + $0x40] sm:$0xff]
    %v117 = vld [vmem:[#allocation7 + $0x48] sm:$0xff]
    %v118 = vld [vmem:[#allocation7 + $0x50] sm:$0xff]
    %v119 = vld [vmem:[#allocation7 + $0x58] sm:$0xff]
    %v120 = vld [vmem:[#allocation7 + $0x60] sm:$0xff]
    %v121 = vld [vmem:[#allocation7 + $0x68] sm:$0xff]
    %v122 = vld [vmem:[#allocation7 + $0x70] sm:$0xff]
    %v123 = vld [vmem:[#allocation7 + $0x78] sm:$0xff]
    %v124 = vld [vmem:[%s4] sm:$0x1]
    %v126 = vperm.slane %v124, 0
    %128 = vmatpush.msra.mxu0 %v123
    %129 = vmatpush.msra.mxu0 %v122
    %130 = vmatpush.msra.mxu0 %v121
    %131 = vmatpush.msra.mxu0 %v120
    %132 = vmatpush.msra.mxu0 %v119
    %133 = vmatpush.msra.mxu0 %v118
    %134 = vmatpush.msra.mxu0 %v117
    %135 = vmatpush.msra.mxu0 %v116
    %136 = vmatpush.msra.mxu0 %v115
    %137 = vmatpush.msra.mxu0 %v114
    %138 = vmatpush.msra.mxu0 %v113
    %139 = vmatpush.msra.mxu0 %v112
    %140 = vmatpush.msra.mxu0 %v111
    %141 = vmatpush.msra.mxu0 %v110
    %142 = vmatpush.msra.mxu0 %v109
    %143 = vmatpush.msra.mxu0 %v108
    %144 = vmatmul.f32.gmra.mxu0 %v107
    %v145 = vpop.f32.mrf.mxu0
    %v146 = vadd.f32 %v126, %v145
    %147 = vdwg.mxu0
    %148 = vst [vmem:[#allocation8] sm:$0xff] %v146
    // Predicated region
    $region34: #{tpu_custom_call.1} parent=1 // pred_check
      _
    $region35: #{tpu_custom_call.1} parent=1 // pred_check_branch
      %150 = sbr.rel (0) target = $region37
    $region36: #{tpu_custom_call.1} parent=1 // pred_region
      %152 = vsyncadd [#allocation4], 0
      %s154 = sshll.u32 [#allocation8], 4
      %s155 = int_to_ptr.vmem [resolvable:$true] %s154
      %s156 = sshll.u32 %s5, 4
      %s157 = int_to_ptr.hbm [resolvable:$true] %s156
      %159 = dma.vmem_to_hbm [thread:$0]  %s155, 128, %s157, [#allocation4]
    $region37: #{tpu_custom_call.1} parent=1 // pred_fallthru
      _
    // Predicated region
    $region38: #{tpu_custom_call.1} parent=1 // pred_check
      _
    $region39: #{tpu_custom_call.1} parent=1 // pred_check_branch
      %161 = sbr.rel (0) target = $region41
    $region40: #{tpu_custom_call.1} parent=1 // pred_region
      %163 = dma.done [#allocation4], 128
    $region41: #{tpu_custom_call.1} parent=1 // pred_fallthru
      _
    %164 = vsyncpa [#allocation3], 1
    %165 = vsyncpa [#allocation6], 1
    %166 = vsyncpa [#allocation4], 1

</llo_original>
